<compile_context>
chip_gen: v7x
topology: tpu7x:2x2x1
jax: 0.10.0
libtpu: 0.0.40
codegen_flags: <defaults>
</compile_context>

<pallas_src>
import jax
import jax.numpy as jnp
from jax.experimental import pallas as pl
from jax.experimental.pallas import tpu as pltpu

_LANES = 128
_MAX_BLOCK_ROWS = 4096   # (4096, 128) f32 = 2 MiB per input block
_EPS = 1e-5


def _num_tensorcores():
    """Best-effort TensorCore-per-chip count; defaults to 1 (always safe)."""
    try:
        info = pltpu.get_tpu_info()
    except Exception:
        return 1
    for name in ("num_cores", "core_count", "num_tensorcores",
                 "tensorcore_count", "cores_per_chip"):
        n = getattr(info, name, None)
        if isinstance(n, int) and n >= 1:
            return n
    return 1


def dice_loss(outputs, targets):
    """Equivalent of DiceLoss()(outputs, targets) (per_image=False, reduce=True)."""
    # TODO(synk): per_image=True / reduce=False variants (per-sample dice) are
    # not implemented; the module default (per_image=False) is reproduced here.
    x = outputs.reshape(-1)
    t = targets.reshape(-1)
    n = x.shape[0]

    if n == 0:
        # all sums are zero -> loss = 1 - eps/eps = 0
        return jnp.float32(0.0)

    # Lane-major 2-D view. Reshape is free when n % 128 == 0 (the common case
    # for NCHW segmentation shapes); otherwise pay one small pad-copy only.
    if n % _LANES != 0:
        pad = _LANES - n % _LANES
        x = jnp.pad(x, (0, pad))
        t = jnp.pad(t, (0, pad))
    rows = x.shape[0] // _LANES
    x2 = x.reshape(rows, _LANES)
    t2 = t.reshape(rows, _LANES)

    # Block never exceeds the array: a block equal to the full first dim is
    # always legal even when not a multiple of 8.
    block_rows = _MAX_BLOCK_ROWS if rows >= _MAX_BLOCK_ROWS else rows
    total_blocks = pl.cdiv(rows, block_rows)

    # Partition across TensorCores only when the chip actually has >1 TC and
    # there is more than one block to split.
    nparts = _num_tensorcores() if total_blocks > 1 else 1
    nparts = max(1, min(nparts, total_blocks))
    nb = pl.cdiv(total_blocks, nparts)          # row-blocks per partition

    # Per-partition vector accumulator shape (kept lane-dense; reduced once).
    acc_rows = 8 if block_rows % 8 == 0 else 1

    def in_index_map(p, j):
        blk = p * nb + j
        # Out-of-range (p, j) pairs (only possible when nparts > 1 and
        # total_blocks % nparts != 0) re-read the last valid block; their
        # contribution is masked to zero inside the kernel.
        return (jnp.minimum(blk, total_blocks - 1), 0)

    def kernel(x_ref, t_ref, part_ref):
        p = pl.program_id(0)
        j = pl.program_id(1)

        @pl.when(j == 0)
        def _():
            part_ref[...] = jnp.zeros_like(part_ref)

        # Cast on the loaded tile (inputs stream through HBM in native dtype).
        x_blk = x_ref[...].astype(jnp.float32)
        t_blk = t_ref[...].astype(jnp.float32)

        # `rows`, `nb`, `block_rows` are static Python ints.
        start = (p * nb + j) * block_rows
        is_full = start + block_rows <= rows

        def accumulate(xb, tb):
            prod = xb * tb   # -> intersection
            ssum = xb + tb   # -> sum(x) + sum(t)
            if acc_rows == 8:
                g = block_rows // 8
                # Fold the leading axis only: pure VPU vreg adds, no XLU reduce.
                part_ref[0] += prod.reshape(g, 8, _LANES).sum(axis=0)
                part_ref[1] += ssum.reshape(g, 8, _LANES).sum(axis=0)
            else:
                part_ref[0] += prod.sum(axis=0, keepdims=True)
                part_ref[1] += ssum.sum(axis=0, keepdims=True)

        # Common path: interior (full) block, no masking work at all.
        @pl.when(is_full)
        def _():
            accumulate(x_blk, t_blk)

        # Rare path: ragged tail / replayed clamped block -> mask then add.
        @pl.when(jnp.logical_not(is_full))
        def _():
            valid = rows - start           # may be <= 0 for replayed blocks
            row_ids = jax.lax.broadcasted_iota(
                jnp.int32, (block_rows, _LANES), 0)
            keep = row_ids < valid
            accumulate(jnp.where(keep, x_blk, 0.0),
                       jnp.where(keep, t_blk, 0.0))

    # Scoped-VMEM budget: 2 inputs x 2 pipeline buffers x block + slack.
    block_bytes = block_rows * _LANES * (
        jnp.dtype(x2.dtype).itemsize + jnp.dtype(t2.dtype).itemsize)
    vmem_limit = int(min(2 * block_bytes + (8 << 20), 64 << 20))

    if nparts > 1:
        core_par = getattr(pltpu, "CORE_PARALLEL", "parallel")
        arb = getattr(pltpu, "ARBITRARY", "arbitrary")
        dim_sem = (core_par, arb)
    else:
        dim_sem = ("arbitrary", "arbitrary")

    partials = pl.pallas_call(
        kernel,
        out_shape=jax.ShapeDtypeStruct((nparts, 2, acc_rows, _LANES), jnp.float32),
        grid_spec=pltpu.PrefetchScalarGridSpec(
            num_scalar_prefetch=0,
            grid=(nparts, nb),
            in_specs=[
                pl.BlockSpec((block_rows, _LANES), in_index_map),
                pl.BlockSpec((block_rows, _LANES), in_index_map),
            ],
            out_specs=pl.BlockSpec((None, 2, acc_rows, _LANES),
                                   lambda p, j: (p, 0, 0, 0)),
        ),
        compiler_params=pltpu.CompilerParams(
            dimension_semantics=dim_sem,
            vmem_limit_bytes=vmem_limit,
        ),
    )(x2, t2)

    # Tiny epilogue reduce + scalar math in plain JAX.
    inter = jnp.sum(partials[:, 0])
    sums = jnp.sum(partials[:, 1])
    return 1.0 - (2.0 * inter + _EPS) / (sums + _EPS)


def _dice_loss_ref(outputs, targets):
    """Pure-JAX reference mirroring soft_dice_loss(per_image=False, reduce=True)."""
    x = outputs.astype(jnp.float32).reshape(1, -1)
    t = targets.astype(jnp.float32).reshape(1, -1)
    inter = jnp.sum(x * t, axis=1)
    union = jnp.sum(x, axis=1) + jnp.sum(t, axis=1) + _EPS
    loss = 1.0 - (2.0 * inter + _EPS) / union
    return jnp.mean(loss)


if __name__ == "__main__":
    key = jax.random.PRNGKey(0)
    k1, k2 = jax.random.split(key)
    # NCHW, small shapes: batch=2, channels=4, spatial=16x16
    outputs = jax.nn.sigmoid(jax.random.normal(k1, (2, 4, 16, 16), jnp.float32))
    targets = (jax.random.uniform(k2, (2, 4, 16, 16)) > 0.5).astype(jnp.float32)

    loss = jax.block_until_ready(dice_loss(outputs, targets))
    ref = jax.block_until_ready(_dice_loss_ref(outputs, targets))

    assert jnp.allclose(loss, ref, rtol=1e-5, atol=1e-6), (loss, ref)
    print("KERNEL_OK")
</pallas_src>

<mosaic_0001>
module attributes {stable_mosaic.version = 11 : i64} {
  func.func @kernel(%arg0: i32, %arg1: i32, %arg2: memref<16x128xf32, #tpu.memory_space<vmem>>, %arg3: memref<16x128xf32, #tpu.memory_space<vmem>>, %arg4: memref<1x2x8x128xf32, #tpu.memory_space<vmem>>) attributes {dimension_semantics = [#tpu.dimension_semantics<arbitrary>, #tpu.dimension_semantics<arbitrary>], iteration_bounds = array<i64: 1, 1>, scalar_prefetch = 0 : i64, scratch_operands = 0 : i64, tpu.core_type = #tpu.core_type<tc>, window_params = [{transform_indices = @transform_0, window_bounds = array<i64: 16, 128>}, {transform_indices = @transform_1, window_bounds = array<i64: 16, 128>}, {transform_indices = @transform_2, window_bounds = array<i64: 1, 2, 8, 128>}]} {
    %c0_i32 = arith.constant 0 : i32
    %0 = arith.cmpi eq, %arg1, %c0_i32 : i32
    %1 = arith.extui %0 : i1 to i32
    %c0_i32_0 = arith.constant 0 : i32
    %2 = arith.cmpi ne, %1, %c0_i32_0 : i32
    scf.if %2 {
      %cst = arith.constant 0.000000e+00 : f32
      %15 = vector.broadcast %cst : f32 to vector<2x8x128xf32>
      %c0_8 = arith.constant 0 : index
      %c0_9 = arith.constant 0 : index
      %c0_10 = arith.constant 0 : index
      %c0_11 = arith.constant 0 : index
      %16 = vector.load %arg4[%c0_8, %c0_9, %c0_10, %c0_11] : memref<1x2x8x128xf32, #tpu.memory_space<vmem>>, vector<1x2x8x128xf32>
      %17 = vector.shape_cast %16 : vector<1x2x8x128xf32> to vector<2x8x128xf32>
      %18 = vector.shape_cast %15 : vector<2x8x128xf32> to vector<1x2x8x128xf32>
      tpu.vector_store %arg4[%c0_8, %c0_9, %c0_10, %c0_11], %18 {strides = array<i32>} : memref<1x2x8x128xf32, #tpu.memory_space<vmem>>, vector<1x2x8x128xf32>,
    } else {
    }
    %c0 = arith.constant 0 : index
    %c0_1 = arith.constant 0 : index
    %3 = vector.load %arg2[%c0, %c0_1] : memref<16x128xf32, #tpu.memory_space<vmem>>, vector<16x128xf32>
    %c0_2 = arith.constant 0 : index
    %c0_3 = arith.constant 0 : index
    %4 = vector.load %arg3[%c0_2, %c0_3] : memref<16x128xf32, #tpu.memory_space<vmem>>, vector<16x128xf32>
    %c1_i32 = arith.constant 1 : i32
    %5 = arith.muli %arg0, %c1_i32 : i32
    %6 = arith.addi %5, %arg1 : i32
    %c16_i32 = arith.constant 16 : i32
    %7 = arith.muli %6, %c16_i32 : i32
    %c16_i32_4 = arith.constant 16 : i32
    %8 = arith.addi %7, %c16_i32_4 : i32
    %c16_i32_5 = arith.constant 16 : i32
    %9 = arith.cmpi sle, %8, %c16_i32_5 : i32
    %10 = arith.extui %9 : i1 to i32
    %c0_i32_6 = arith.constant 0 : i32
    %11 = arith.cmpi ne, %10, %c0_i32_6 : i32
    scf.if %11 {
      %15 = arith.mulf %3, %4 : vector<16x128xf32>
      %16 = arith.addf %3, %4 : vector<16x128xf32>
      %c0_8 = arith.constant 0 : index
      %c0_9 = arith.constant 0 : index
      %c0_10 = arith.constant 0 : index
      %c0_11 = arith.constant 0 : index
      %17 = vector.load %arg4[%c0_8, %c0_9, %c0_10, %c0_11] : memref<1x2x8x128xf32, #tpu.memory_space<vmem>>, vector<1x1x8x128xf32>
      %18 = vector.shape_cast %17 : vector<1x1x8x128xf32> to vector<8x128xf32>
      %19 = vector.shape_cast %15 : vector<16x128xf32> to vector<2x8x128xf32>
      %cst = arith.constant dense<0.000000e+00> : vector<8x128xf32>
      %20 = vector.multi_reduction <add>, %19, %cst [0] : vector<2x8x128xf32> to vector<8x128xf32>
      %21 = arith.addf %18, %20 : vector<8x128xf32>
      %c0_12 = arith.constant 0 : index
      %c0_13 = arith.constant 0 : index
      %c0_14 = arith.constant 0 : index
      %c0_15 = arith.constant 0 : index
      %22 = vector.load %arg4[%c0_12, %c0_13, %c0_14, %c0_15] : memref<1x2x8x128xf32, #tpu.memory_space<vmem>>, vector<1x1x8x128xf32>
      %23 = vector.shape_cast %22 : vector<1x1x8x128xf32> to vector<8x128xf32>
      %24 = vector.shape_cast %21 : vector<8x128xf32> to vector<1x1x8x128xf32>
      tpu.vector_store %arg4[%c0_12, %c0_13, %c0_14, %c0_15], %24 {strides = array<i32>} : memref<1x2x8x128xf32, #tpu.memory_space<vmem>>, vector<1x1x8x128xf32>,
      %c0_16 = arith.constant 0 : index
      %c1 = arith.constant 1 : index
      %c0_17 = arith.constant 0 : index
      %c0_18 = arith.constant 0 : index
      %25 = vector.load %arg4[%c0_16, %c1, %c0_17, %c0_18] : memref<1x2x8x128xf32, #tpu.memory_space<vmem>>, vector<1x1x8x128xf32>
      %26 = vector.shape_cast %25 : vector<1x1x8x128xf32> to vector<8x128xf32>
      %27 = vector.shape_cast %16 : vector<16x128xf32> to vector<2x8x128xf32>
      %cst_19 = arith.constant dense<0.000000e+00> : vector<8x128xf32>
      %28 = vector.multi_reduction <add>, %27, %cst_19 [0] : vector<2x8x128xf32> to vector<8x128xf32>
      %29 = arith.addf %26, %28 : vector<8x128xf32>
      %c0_20 = arith.constant 0 : index
      %c1_21 = arith.constant 1 : index
      %c0_22 = arith.constant 0 : index
      %c0_23 = arith.constant 0 : index
      %30 = vector.load %arg4[%c0_20, %c1_21, %c0_22, %c0_23] : memref<1x2x8x128xf32, #tpu.memory_space<vmem>>, vector<1x1x8x128xf32>
      %31 = vector.shape_cast %30 : vector<1x1x8x128xf32> to vector<8x128xf32>
      %32 = vector.shape_cast %29 : vector<8x128xf32> to vector<1x1x8x128xf32>
      tpu.vector_store %arg4[%c0_20, %c1_21, %c0_22, %c0_23], %32 {strides = array<i32>} : memref<1x2x8x128xf32, #tpu.memory_space<vmem>>, vector<1x1x8x128xf32>,
    } else {
    }
    %true = arith.constant true
    %12 = arith.xori %9, %true : i1
    %13 = arith.extui %12 : i1 to i32
    %c0_i32_7 = arith.constant 0 : i32
    %14 = arith.cmpi ne, %13, %c0_i32_7 : i32
    scf.if %14 {
      %c16_i32_8 = arith.constant 16 : i32
      %15 = arith.subi %c16_i32_8, %7 : i32
      %16 = tpu.iota {dimensions = array<i32: 0>} : vector<16x128xi32>
      %17 = vector.broadcast %15 : i32 to vector<16x128xi32>
      %18 = arith.cmpi slt, %16, %17 : vector<16x128xi32>
      %cst = arith.constant 0.000000e+00 : f32
      %19 = vector.broadcast %cst : f32 to vector<16x128xf32>
      %20 = arith.select %18, %3, %19 : vector<16x128xi1>, vector<16x128xf32>
      %cst_9 = arith.constant 0.000000e+00 : f32
      %21 = vector.broadcast %cst_9 : f32 to vector<16x128xf32>
      %22 = arith.select %18, %4, %21 : vector<16x128xi1>, vector<16x128xf32>
      %23 = arith.mulf %20, %22 : vector<16x128xf32>
      %24 = arith.addf %20, %22 : vector<16x128xf32>
      %c0_10 = arith.constant 0 : index
      %c0_11 = arith.constant 0 : index
      %c0_12 = arith.constant 0 : index
      %c0_13 = arith.constant 0 : index
      %25 = vector.load %arg4[%c0_10, %c0_11, %c0_12, %c0_13] : memref<1x2x8x128xf32, #tpu.memory_space<vmem>>, vector<1x1x8x128xf32>
      %26 = vector.shape_cast %25 : vector<1x1x8x128xf32> to vector<8x128xf32>
      %27 = vector.shape_cast %23 : vector<16x128xf32> to vector<2x8x128xf32>
      %cst_14 = arith.constant dense<0.000000e+00> : vector<8x128xf32>
      %28 = vector.multi_reduction <add>, %27, %cst_14 [0] : vector<2x8x128xf32> to vector<8x128xf32>
      %29 = arith.addf %26, %28 : vector<8x128xf32>
      %c0_15 = arith.constant 0 : index
      %c0_16 = arith.constant 0 : index
      %c0_17 = arith.constant 0 : index
      %c0_18 = arith.constant 0 : index
      %30 = vector.load %arg4[%c0_15, %c0_16, %c0_17, %c0_18] : memref<1x2x8x128xf32, #tpu.memory_space<vmem>>, vector<1x1x8x128xf32>
      %31 = vector.shape_cast %30 : vector<1x1x8x128xf32> to vector<8x128xf32>
      %32 = vector.shape_cast %29 : vector<8x128xf32> to vector<1x1x8x128xf32>
      tpu.vector_store %arg4[%c0_15, %c0_16, %c0_17, %c0_18], %32 {strides = array<i32>} : memref<1x2x8x128xf32, #tpu.memory_space<vmem>>, vector<1x1x8x128xf32>,
      %c0_19 = arith.constant 0 : index
      %c1 = arith.constant 1 : index
      %c0_20 = arith.constant 0 : index
      %c0_21 = arith.constant 0 : index
      %33 = vector.load %arg4[%c0_19, %c1, %c0_20, %c0_21] : memref<1x2x8x128xf32, #tpu.memory_space<vmem>>, vector<1x1x8x128xf32>
      %34 = vector.shape_cast %33 : vector<1x1x8x128xf32> to vector<8x128xf32>
      %35 = vector.shape_cast %24 : vector<16x128xf32> to vector<2x8x128xf32>
      %cst_22 = arith.constant dense<0.000000e+00> : vector<8x128xf32>
      %36 = vector.multi_reduction <add>, %35, %cst_22 [0] : vector<2x8x128xf32> to vector<8x128xf32>
      %37 = arith.addf %34, %36 : vector<8x128xf32>
      %c0_23 = arith.constant 0 : index
      %c1_24 = arith.constant 1 : index
      %c0_25 = arith.constant 0 : index
      %c0_26 = arith.constant 0 : index
      %38 = vector.load %arg4[%c0_23, %c1_24, %c0_25, %c0_26] : memref<1x2x8x128xf32, #tpu.memory_space<vmem>>, vector<1x1x8x128xf32>
      %39 = vector.shape_cast %38 : vector<1x1x8x128xf32> to vector<8x128xf32>
      %40 = vector.shape_cast %37 : vector<8x128xf32> to vector<1x1x8x128xf32>
      tpu.vector_store %arg4[%c0_23, %c1_24, %c0_25, %c0_26], %40 {strides = array<i32>} : memref<1x2x8x128xf32, #tpu.memory_space<vmem>>, vector<1x1x8x128xf32>,
    } else {
    }
    return
  }
  func.func @transform_0(%arg0: i32, %arg1: i32) -> (i32, i32) {
    %c1_i32 = arith.constant 1 : i32
    %0 = arith.muli %arg0, %c1_i32 : i32
    %1 = arith.addi %0, %arg1 : i32
    %c0_i32 = arith.constant 0 : i32
    %2 = arith.minsi %1, %c0_i32 : i32
    %c0_i32_0 = arith.constant 0 : i32
    %c0_i32_1 = arith.constant 0 : i32
    return %2, %c0_i32_0 : i32, i32
  }
  func.func @transform_1(%arg0: i32, %arg1: i32) -> (i32, i32) {
    %c1_i32 = arith.constant 1 : i32
    %0 = arith.muli %arg0, %c1_i32 : i32
    %1 = arith.addi %0, %arg1 : i32
    %c0_i32 = arith.constant 0 : i32
    %2 = arith.minsi %1, %c0_i32 : i32
    %c0_i32_0 = arith.constant 0 : i32
    %c0_i32_1 = arith.constant 0 : i32
    return %2, %c0_i32_0 : i32, i32
  }
  func.func @transform_2(%arg0: i32, %arg1: i32) -> (i32, i32, i32, i32) {
    %c0_i32 = arith.constant 0 : i32
    %c0_i32_0 = arith.constant 0 : i32
    %c0_i32_1 = arith.constant 0 : i32
    %c0_i32_2 = arith.constant 0 : i32
    return %arg0, %c0_i32, %c0_i32_0, %c0_i32_1 : i32, i32, i32, i32
  }
}

</mosaic_0001>

<llo_original>
// kernel: tpu_custom_call.1
$region0: #{tpu_custom_call.1}
  #allocation0 [shape = 'u32[]', space=smem, size = 0x4, offset = 0x4, fixed_abs, tag = 'smem constant byte address 0x4 - core index']
  #allocation1 [shape = 'u32[144,128]{1,0:T(1,128)}', space=vmem, size = 0x12000, scoped, tag = 'internal scratch']
  %s0 = inlined_call_operand.hbm [shape: f32[16,128], index: 0, kind: input, shape index: {}]
  %s1 = inlined_call_operand.hbm [shape: f32[16,128], index: 1, kind: input, shape index: {}]
  %s2 = inlined_call_operand.hbm [shape: f32[1,2,8,128], index: 2, kind: output, shape index: {}]
  %s3 = sld [smem:[#allocation0]]
  $region38: #{tpu_custom_call.1} parent=0
    _
  %s5 = ssub.s32 1, %s3
  %s6 = scalar_select 0, %s5, %s3
  $region1: #{tpu_custom_call.1} parent=0
    #allocation2 [shape = 'u8[8192]{0}', space=vmem, size = 0x2000, scoped, tag = 'input window, operand 0, single buffered']
    #allocation3 [shape = 's32[1]{0}', space=sflag, size = 0x4, scoped, tag = 'scoped memory for tpu_custom_call.1']
    #allocation4 [shape = 's32[1]{0}', space=sflag, size = 0x4, scoped, tag = 'scoped memory for tpu_custom_call.1']
    #allocation5 [shape = 'u8[8192]{0}', space=vmem, size = 0x2000, scoped, tag = 'input window, operand 1, single buffered']
    #allocation6 [shape = 's32[1]{0}', space=sflag, size = 0x4, scoped, tag = 'scoped memory for tpu_custom_call.1']
    #allocation7 [shape = 'u8[8192]{0}', space=vmem, size = 0x2000, scoped, tag = 'output window, operand 0, single buffered']
    %7 = vsyncpa [#allocation3], 0
    %8 = vsyncpa [#allocation6], 0
    %9 = vsyncpa [#allocation4], 0
    // Predicated region
    $region2: #{tpu_custom_call.1} parent=1 // pred_check
      _
    $region3: #{tpu_custom_call.1} parent=1 // pred_check_branch
      %11 = sbr.rel (0) target = $region5
    $region4: #{tpu_custom_call.1} parent=1 // pred_region
      %s12 = sadd.s32 0, 0
      %p13 = scmp.lt.s32.totalorder %s12, 0
      %s14 = scalar_select %p13, %s12, 0
      %s15 = smul.u32 2, %s14
      %s17 = ssub.s32 256, 256
      %18 = vsyncadd [#allocation3], %s17
      %s19 = smul.addr %s15, 128
      %s20 = scalar_lea.hbm %s0, %s19
      %s21 = sshll.u32 [#allocation2], 4
      %s22 = int_to_ptr.vmem [resolvable:$true] %s21
      %27 = dma.hbm_to_vmem [thread:$0]  %s20, 256, %s22, [#allocation3], 128, 128, 8
    $region5: #{tpu_custom_call.1} parent=1 // pred_fallthru
      _
    // Predicated region
    $region6: #{tpu_custom_call.1} parent=1 // pred_check
      _
    $region7: #{tpu_custom_call.1} parent=1 // pred_check_branch
      %29 = sbr.rel (0) target = $region9
    $region8: #{tpu_custom_call.1} parent=1 // pred_region
      %s30 = sadd.s32 0, 0
      %p31 = scmp.lt.s32.totalorder %s30, 0
      %s32 = scalar_select %p31, %s30, 0
      %s33 = smul.u32 2, %s32
      %s35 = ssub.s32 256, 256
      %36 = vsyncadd [#allocation6], %s35
      %s37 = smul.addr %s33, 128
      %s38 = scalar_lea.hbm %s1, %s37
      %s39 = sshll.u32 [#allocation5], 4
      %s40 = int_to_ptr.vmem [resolvable:$true] %s39
      %45 = dma.hbm_to_vmem [thread:$0]  %s38, 256, %s40, [#allocation6], 128, 128, 8
    $region9: #{tpu_custom_call.1} parent=1 // pred_fallthru
      _
    // Predicated region
    $region10: #{tpu_custom_call.1} parent=1 // pred_check
      _
    $region11: #{tpu_custom_call.1} parent=1 // pred_check_branch
      %47 = sbr.rel (0) target = $region13
    $region12: #{tpu_custom_call.1} parent=1 // pred_region
      %48 = dma.done [#allocation3], 256
    $region13: #{tpu_custom_call.1} parent=1 // pred_fallthru
      _
    // Predicated region
    $region14: #{tpu_custom_call.1} parent=1 // pred_check
      _
    $region15: #{tpu_custom_call.1} parent=1 // pred_check_branch
      %50 = sbr.rel (0) target = $region17
    $region16: #{tpu_custom_call.1} parent=1 // pred_region
      %51 = dma.done [#allocation6], 256
    $region17: #{tpu_custom_call.1} parent=1 // pred_fallthru
      _
    %s52 = sadd.s32 0, 0
    %p53 = scmp.lt.s32.totalorder %s52, 0
    %s54 = scalar_select %p53, %s52, 0
    %s55 = smul.u32 2, %s54
    %s56 = sadd.s32 0, 0
    %p57 = scmp.lt.s32.totalorder %s56, 0
    %s58 = scalar_select %p57, %s56, 0
    %s59 = smul.u32 2, %s58
    %p60 = scmp.eq.s32.totalorder 0, 0
    // Predicated region
    $region18: #{tpu_custom_call.1} parent=1 // pred_check
      %p61 = pneg %p60
    $region19: #{tpu_custom_call.1} parent=1 // pred_check_branch
      %63 = sbr.rel (%p61) target = $region21
    $region20: #{tpu_custom_call.1} parent=1 // pred_region
      %64 = vst [vmem:[#allocation7] sm:$0xff] 0.0
      %65 = vst [vmem:[#allocation7 + $0x8] sm:$0xff] 0.0
    $region21: #{tpu_custom_call.1} parent=1 // pred_fallthru
      _
    %v66 = vld [vmem:[#allocation2] sm:$0xff]
    %v67 = vld [vmem:[#allocation2 + $0x8] sm:$0xff]
    %v68 = vld [vmem:[#allocation5] sm:$0xff]
    %v69 = vld [vmem:[#allocation5 + $0x8] sm:$0xff]
    %s70 = sadd.s32 0, 0
    %s71 = smul.u32 %s70, 16
    %s72 = sadd.s32 %s71, 16
    %p73 = scmp.le.s32.totalorder %s72, 16
    // Predicated region
    $region22: #{tpu_custom_call.1} parent=1 // pred_check
      %p74 = pneg %p73
    $region23: #{tpu_custom_call.1} parent=1 // pred_check_branch
      %76 = sbr.rel (%p74) target = $region25
    $region24: #{tpu_custom_call.1} parent=1 // pred_region
      %v77 = vmul.f32 %v66, %v68
      %v78 = vmul.f32 %v67, %v69
      %v79 = vadd.f32 %v66, %v68
      %v80 = vadd.f32 %v67, %v69
      %v81 = vld [vmem:[#allocation7] sm:$0xff]
      %v82 = vadd.f32 %v77, %v78
      %v83 = vadd.f32 %v81, %v82
      %84 = vst [vmem:[#allocation7] sm:$0xff] %v83
      %s85 = scalar_lea.vmem [#allocation7], 8
      %v86 = vld [vmem:[%s85] sm:$0xff]
      %v87 = vadd.f32 %v79, %v80
      %v88 = vadd.f32 %v86, %v87
      %89 = vst [vmem:[%s85] sm:$0xff] %v88
    $region25: #{tpu_custom_call.1} parent=1 // pred_fallthru
      _
    %p90 = scmp.gt.s32.totalorder %s72, 16
    // Predicated region
    $region26: #{tpu_custom_call.1} parent=1 // pred_check
      %p91 = pneg %p90
    $region27: #{tpu_custom_call.1} parent=1 // pred_check_branch
      %93 = sbr.rel (%p91) target = $region29
    $region28: #{tpu_custom_call.1} parent=1 // pred_region
      %s94 = ssub.s32 16, %s71
      %v95 = vlaneseq
      %v96 = vshrl.u32 %v95, 7
      %v97 = vadd.s32 %v96, 8
      %v98 = vstv %s94
      %vm99 = vcmp.lt.s32.totalorder %v96, %v98
      %vm100 = vcmp.lt.s32.totalorder %v97, %v98
      %v101 = vsel %vm99, %v66, 0.0
      %v102 = vsel %vm100, %v67, 0.0
      %v103 = vsel %vm99, %v68, 0.0
      %v104 = vsel %vm100, %v69, 0.0
      %v105 = vmul.f32 %v101, %v103
      %v106 = vmul.f32 %v102, %v104
      %v107 = vadd.f32 %v101, %v103
      %v108 = vadd.f32 %v102, %v104
      %v109 = vld [vmem:[#allocation7] sm:$0xff]
      %v110 = vadd.f32 %v105, %v106
      %v111 = vadd.f32 %v109, %v110
      %112 = vst [vmem:[#allocation7] sm:$0xff] %v111
      %s113 = scalar_lea.vmem [#allocation7], 8
      %v114 = vld [vmem:[%s113] sm:$0xff]
      %v115 = vadd.f32 %v107, %v108
      %v116 = vadd.f32 %v114, %v115
      %117 = vst [vmem:[%s113] sm:$0xff] %v116
    $region29: #{tpu_custom_call.1} parent=1 // pred_fallthru
      _
    // Predicated region
    $region30: #{tpu_custom_call.1} parent=1 // pred_check
      _
    $region31: #{tpu_custom_call.1} parent=1 // pred_check_branch
      %119 = sbr.rel (0) target = $region33
    $region32: #{tpu_custom_call.1} parent=1 // pred_region
      %s121 = ssub.s32 256, 256
      %122 = vsyncadd [#allocation4], %s121
      %s123 = sshll.u32 [#allocation7], 4
      %s124 = int_to_ptr.vmem [resolvable:$true] %s123
      %129 = dma.vmem_to_hbm [thread:$0]  %s124, 256, %s2, [#allocation4], 128, 128, 8
    $region33: #{tpu_custom_call.1} parent=1 // pred_fallthru
      _
    // Predicated region
    $region34: #{tpu_custom_call.1} parent=1 // pred_check
      _
    $region35: #{tpu_custom_call.1} parent=1 // pred_check_branch
      %131 = sbr.rel (0) target = $region37
    $region36: #{tpu_custom_call.1} parent=1 // pred_region
      %132 = dma.done [#allocation4], 256
    $region37: #{tpu_custom_call.1} parent=1 // pred_fallthru
      _
    %133 = vsyncpa [#allocation3], 1
    %134 = vsyncpa [#allocation6], 1
    %135 = vsyncpa [#allocation4], 1

</llo_original>
